<compile_context>
chip_gen: v6e
topology: v6e:2x2x1
jax: 0.10.0
libtpu: 0.0.40
codegen_flags: <defaults>
</compile_context>

<pallas_src>
import math

import jax
import jax.numpy as jnp
from jax import lax
from jax.experimental import pallas as pl
from jax.experimental.pallas import tpu as pltpu


# ---------------------------------------------------------------------------
# Kernels
# ---------------------------------------------------------------------------

def _linear_single_kernel(x_ref, w_ref, b_ref, o_ref):
    """Whole problem resident in VMEM: one MXU dot + bias add.

    x: [B, K], w: [S, K] (native PyTorch layout), b: [1, S], o: [B, S].
    Contraction on the last dims of both operands (flash-attention-style);
    no wrapper transpose, no in-kernel weight reshuffle.
    """
    acc = lax.dot_general(
        x_ref[...], w_ref[...],
        dimension_numbers=(((1,), (1,)), ((), ())),
        preferred_element_type=jnp.float32,
    )
    o_ref[...] = (acc + b_ref[...].astype(jnp.float32)).astype(o_ref.dtype)


def _make_blocked_kernel(*, K, tk, cps):
    """K-blocked reduction kernel (fallback for K too large for one shot).

    Grid = (n_splits, cps):
      axis 0 ("parallel")  : contiguous K ranges (one per TensorCore on v7x),
                             each producing a partial (B, S) f32 output.
      axis 1 ("arbitrary") : K chunks within a split (reduction axis).
    Bias is folded into the split-0 accumulator init; a static lane mask
    zeroes the tail when tk does not divide K (no per-call jnp.pad).
    """
    needs_mask = (K % tk) != 0

    def kernel(x_ref, w_ref, b_ref, o_ref, acc_ref):
        s = pl.program_id(0)
        j = pl.program_id(1)

        @pl.when(j == 0)
        def _():
            # Bias only in split 0 so the wrapper-side sum over splits is exact.
            scale = (s == 0).astype(jnp.float32)
            acc_ref[...] = jnp.broadcast_to(
                b_ref[...].astype(jnp.float32) * scale, acc_ref.shape
            )

        x = x_ref[...]
        w = w_ref[...]
        if needs_mask:
            g = s * cps + j                                   # global chunk idx
            lane = lax.broadcasted_iota(jnp.int32, (1, tk), 1)
            valid = (g * tk + lane) < K
            x = jnp.where(valid, x, jnp.zeros_like(x))
            w = jnp.where(valid, w, jnp.zeros_like(w))

        acc_ref[...] += lax.dot_general(
            x, w,
            dimension_numbers=(((1,), (1,)), ((), ())),
            preferred_element_type=jnp.float32,
        )

        @pl.when(j == cps - 1)
        def _():
            o_ref[0] = acc_ref[...]

    return kernel


# ---------------------------------------------------------------------------
# Wrapper helpers
# ---------------------------------------------------------------------------

def _ceil_to(x, m):
    return ((x + m - 1) // m) * m


def _vmem_tile_bytes(shape, dtype):
    """Bytes of one array once padded to the TPU (sublane, lane) = (8, 128) tile."""
    itemsize = jnp.dtype(dtype).itemsize
    shape = tuple(shape)
    if len(shape) == 1:
        shape = (1,) + shape
    lead = math.prod(shape[:-2]) if len(shape) > 2 else 1
    return lead * _ceil_to(shape[-2], 8) * _ceil_to(shape[-1], 128) * itemsize


def _pick_tk(K, tk_max):
    """Largest multiple-of-128 chunk <= tk_max, preferring exact divisors of K."""
    tk_max = max(128, (tk_max // 128) * 128)
    if K <= tk_max:
        return K
    for cand in range(tk_max, 127, -128):
        if K % cand == 0:
            return cand
    return tk_max      # tail chunk handled by the in-kernel mask


# ---------------------------------------------------------------------------
# Public forward
# ---------------------------------------------------------------------------

def specific_forward(imgs, weight, bias, *,
                     tk_max=8192,
                     vmem_budget_bytes=12 * 1024 * 1024,
                     cast_to_bf16=False):
    """Forward pass of `Specific`: x = Linear(flatten(imgs)).

    imgs:   [B, ...]   (flattened per example; K = prod(trailing dims))
    weight: [S, K]     (native PyTorch nn.Linear layout)
    bias:   [S]
    """
    out_dtype = imgs.dtype
    B = imgs.shape[0]
    x = imgs.reshape(B, -1)
    K = x.shape[1]
    S = weight.shape[0]
    b2 = bias.reshape(1, S)

    if cast_to_bf16:
        # Halves the dominant weight DMA; accumulation stays f32.
        x = x.astype(jnp.bfloat16)
        weight = weight.astype(jnp.bfloat16)

    # --- Single-shot path: whole problem resident in VMEM, one invocation,
    # no grid, no double buffering. Footprint includes (8,128) tile padding;
    # the 12 MiB default budget is safe under every generation's default
    # scoped-VMEM limit (v5e 16 MiB, v6e/v7x 32 MiB).
    resident = (_vmem_tile_bytes((B, K), x.dtype)
                + _vmem_tile_bytes((S, K), weight.dtype)
                + _vmem_tile_bytes((1, S), b2.dtype)
                + _vmem_tile_bytes((B, S), out_dtype))
    if resident <= vmem_budget_bytes:
        return pl.pallas_call(
            _linear_single_kernel,
            out_shape=jax.ShapeDtypeStruct((B, S), out_dtype),
            in_specs=[
                pl.BlockSpec(memory_space=pltpu.MemorySpace.VMEM),
                pl.BlockSpec(memory_space=pltpu.MemorySpace.VMEM),
                pl.BlockSpec(memory_space=pltpu.MemorySpace.VMEM),
            ],
            out_specs=pl.BlockSpec(memory_space=pltpu.MemorySpace.VMEM),
        )(x, weight, b2)

    # --- K-blocked fallback (large K): stream the weight in big chunks, fold
    # the bias into the split-0 accumulator, and split the reduction across a
    # leading "parallel" axis (both TensorCores on v7x; harmless elsewhere).
    tk = _pick_tk(K, tk_max)
    n_chunks = int(pl.cdiv(K, tk))
    n_splits = 2 if (n_chunks % 2 == 0 and n_chunks >= 2) else 1
    cps = n_chunks // n_splits                      # chunks per split

    kernel = _make_blocked_kernel(K=K, tk=tk, cps=cps)
    partials = pl.pallas_call(
        kernel,
        out_shape=jax.ShapeDtypeStruct((n_splits, B, S), jnp.float32),
        grid=(n_splits, cps),
        in_specs=[
            pl.BlockSpec((B, tk), lambda s, j: (0, s * cps + j)),   # x chunk
            pl.BlockSpec((S, tk), lambda s, j: (0, s * cps + j)),   # W chunk
            pl.BlockSpec((1, S), lambda s, j: (0, 0)),              # bias
        ],
        out_specs=pl.BlockSpec((1, B, S), lambda s, j: (s, 0, 0)),
        scratch_shapes=[pltpu.VMEM((B, S), jnp.float32)],
        compiler_params=pltpu.CompilerParams(
            dimension_semantics=("parallel", "arbitrary"),
        ),
    )(x, weight, b2)
    return partials.sum(axis=0).astype(out_dtype)


# ---------------------------------------------------------------------------
# Self-test
# ---------------------------------------------------------------------------

if __name__ == "__main__":
    # Shapes consistent with the module: img_shape = (4, 16, 16), specific_size = 32
    B, C, H, W = 2, 4, 16, 16
    specific_size = 32
    in_features = C * H * W  # 1024

    key = jax.random.PRNGKey(0)
    k_img, k_w, k_b = jax.random.split(key, 3)

    imgs = jax.random.normal(k_img, (B, C, H, W), dtype=jnp.float32)

    # Deterministic init mimicking PyTorch nn.Linear default: U(-1/sqrt(K), 1/sqrt(K))
    bound = 1.0 / math.sqrt(in_features)
    weight = jax.random.uniform(
        k_w, (specific_size, in_features), minval=-bound, maxval=bound,
        dtype=jnp.float32)
    bias = jax.random.uniform(
        k_b, (specific_size,), minval=-bound, maxval=bound, dtype=jnp.float32)

    ref = imgs.reshape(B, -1) @ weight.T + bias

    # Common case: single-shot, fully VMEM-resident, no pipeline machinery.
    out = jax.block_until_ready(specific_forward(imgs, weight, bias))
    assert out.shape == (B, specific_size)
    assert jnp.allclose(out, ref, atol=1e-4, rtol=1e-4)

    # Exercise the K-blocked fallback (forced with a zero budget):
    #  a) tk divides K -> 4 chunks, 2-way "parallel" split of the reduction.
    out_blocked = jax.block_until_ready(
        specific_forward(imgs, weight, bias, vmem_budget_bytes=0, tk_max=256))
    assert jnp.allclose(out_blocked, ref, atol=1e-4, rtol=1e-4)

    #  b) K = 588 is not a multiple of the 256-wide chunk -> masked-tail path.
    imgs2 = jax.random.normal(k_img, (B, 3, 14, 14), dtype=jnp.float32)
    w2 = jax.random.uniform(
        k_w, (specific_size, 3 * 14 * 14), minval=-bound, maxval=bound,
        dtype=jnp.float32)
    ref2 = imgs2.reshape(B, -1) @ w2.T + bias
    out2 = jax.block_until_ready(
        specific_forward(imgs2, w2, bias, vmem_budget_bytes=0, tk_max=256))
    assert jnp.allclose(out2, ref2, atol=1e-4, rtol=1e-4)

    print("KERNEL_OK")
</pallas_src>

<mosaic_0001>
module attributes {stable_mosaic.version = 11 : i64} {
  func.func @_linear_single_kernel(%arg0: memref<2x1024xf32, #tpu.memory_space<vmem>>, %arg1: memref<32x1024xf32, #tpu.memory_space<vmem>>, %arg2: memref<1x32xf32, #tpu.memory_space<vmem>>, %arg3: memref<2x32xf32, #tpu.memory_space<vmem>>) attributes {dimension_semantics = [], scalar_prefetch = 0 : i64, scratch_operands = 0 : i64, tpu.core_type = #tpu.core_type<tc>} {
    %c0 = arith.constant 0 : index
    %c0_0 = arith.constant 0 : index
    %0 = vector.load %arg0[%c0, %c0_0] : memref<2x1024xf32, #tpu.memory_space<vmem>>, vector<2x1024xf32>
    %c0_1 = arith.constant 0 : index
    %c0_2 = arith.constant 0 : index
    %1 = vector.load %arg1[%c0_1, %c0_2] : memref<32x1024xf32, #tpu.memory_space<vmem>>, vector<32x1024xf32>
    %cst = arith.constant dense<0.000000e+00> : vector<2x32xf32>
    %2 = tpu.matmul %0, %1, %cst {dimension_numbers = #tpu.dot_dimension_numbers<[1], [1], [0], [0], [0, 0, 1, 0], [], []>} : vector<2x1024xf32>, vector<32x1024xf32>, vector<2x32xf32> -> vector<2x32xf32>
    %c0_3 = arith.constant 0 : index
    %c0_4 = arith.constant 0 : index
    %3 = vector.load %arg2[%c0_3, %c0_4] : memref<1x32xf32, #tpu.memory_space<vmem>>, vector<1x32xf32>
    %4 = vector.broadcast %3 : vector<1x32xf32> to vector<2x32xf32>
    %5 = arith.addf %2, %4 : vector<2x32xf32>
    %c0_5 = arith.constant 0 : index
    %c0_6 = arith.constant 0 : index
    %6 = vector.load %arg3[%c0_5, %c0_6] : memref<2x32xf32, #tpu.memory_space<vmem>>, vector<2x32xf32>
    tpu.vector_store %arg3[%c0_5, %c0_6], %5 {strides = array<i32>} : memref<2x32xf32, #tpu.memory_space<vmem>>, vector<2x32xf32>,
    return
  }
}

</mosaic_0001>

<llo_original>
// kernel: tpu_custom_call.1
$region0: #{tpu_custom_call.1}
  #allocation0 [shape = 'u32[]', space=smem, size = 0x4, offset = 0x4, fixed_abs, tag = 'smem constant byte address 0x4 - core index']
  #allocation1 [shape = 'u32[144,128]{1,0:T(1,128)}', space=vmem, size = 0x12000, scoped, tag = 'internal scratch']
  %s0 = inlined_call_operand.hbm [shape: f32[2,1024], index: 0, kind: input, shape index: {}]
  %s1 = inlined_call_operand.hbm [shape: f32[32,1024], index: 1, kind: input, shape index: {}]
  %s2 = inlined_call_operand.vmem [shape: f32[1,32], index: 2, kind: input, shape index: {}]
  %s3 = inlined_call_operand.hbm [shape: f32[2,32], index: 3, kind: output, shape index: {}]
  %s4 = sld [smem:[#allocation0]]
  $region30: #{tpu_custom_call.1} parent=0
    _
  %s6 = ssub.s32 1, %s4
  %s7 = scalar_select 0, %s6, %s4
  $region1: #{tpu_custom_call.1} parent=0
    #allocation2 [shape = 'u8[8192]{0}', space=vmem, size = 0x2000, scoped, tag = 'input window, operand 0, single buffered']
    #allocation3 [shape = 's32[1]{0}', space=sflag, size = 0x4, scoped, tag = 'scoped memory for tpu_custom_call.1']
    #allocation4 [shape = 's32[1]{0}', space=sflag, size = 0x4, scoped, tag = 'scoped memory for tpu_custom_call.1']
    #allocation5 [shape = 'u8[131072]{0}', space=vmem, size = 0x20000, scoped, tag = 'input window, operand 1, single buffered']
    #allocation6 [shape = 's32[1]{0}', space=sflag, size = 0x4, scoped, tag = 'scoped memory for tpu_custom_call.1']
    #allocation7 [shape = 'u8[1024]{0}', space=vmem, size = 0x400, scoped, tag = 'output window, operand 0, single buffered']
    %8 = vsyncpa [#allocation3], 0
    %9 = vsyncpa [#allocation6], 0
    %10 = vsyncpa [#allocation4], 0
    // Predicated region
    $region2: #{tpu_custom_call.1} parent=1 // pred_check
      _
    $region3: #{tpu_custom_call.1} parent=1 // pred_check_branch
      %12 = sbr.rel (0) target = $region5
    $region4: #{tpu_custom_call.1} parent=1 // pred_region
      %s14 = ssub.s32 256, 256
      %15 = vsyncadd [#allocation3], %s14
      %s17 = sshll.u32 [#allocation2], 4
      %s18 = int_to_ptr.vmem [resolvable:$true] %s17
      %20 = dma.hbm_to_vmem [thread:$0]  %s0, 256, %s18, [#allocation3]
    $region5: #{tpu_custom_call.1} parent=1 // pred_fallthru
      _
    // Predicated region
    $region6: #{tpu_custom_call.1} parent=1 // pred_check
      _
    $region7: #{tpu_custom_call.1} parent=1 // pred_check_branch
      %22 = sbr.rel (0) target = $region9
    $region8: #{tpu_custom_call.1} parent=1 // pred_region
      %s24 = ssub.s32 4096, 4096
      %25 = vsyncadd [#allocation6], %s24
      %s26 = sshll.u32 [#allocation5], 4
      %s27 = int_to_ptr.vmem [resolvable:$true] %s26
      %32 = dma.hbm_to_vmem [thread:$0]  %s1, 4096, %s27, [#allocation6], 1024, 1024, 64
    $region9: #{tpu_custom_call.1} parent=1 // pred_fallthru
      _
    // Predicated region
    $region10: #{tpu_custom_call.1} parent=1 // pred_check
      _
    $region11: #{tpu_custom_call.1} parent=1 // pred_check_branch
      %34 = sbr.rel (0) target = $region13
    $region12: #{tpu_custom_call.1} parent=1 // pred_region
      _
    $region13: #{tpu_custom_call.1} parent=1 // pred_fallthru
      _
    // Predicated region
    $region14: #{tpu_custom_call.1} parent=1 // pred_check
      _
    $region15: #{tpu_custom_call.1} parent=1 // pred_check_branch
      %36 = sbr.rel (0) target = $region17
    $region16: #{tpu_custom_call.1} parent=1 // pred_region
      %37 = dma.done [#allocation3], 256
    $region17: #{tpu_custom_call.1} parent=1 // pred_fallthru
      _
    // Predicated region
    $region18: #{tpu_custom_call.1} parent=1 // pred_check
      _
    $region19: #{tpu_custom_call.1} parent=1 // pred_check_branch
      %39 = sbr.rel (0) target = $region21
    $region20: #{tpu_custom_call.1} parent=1 // pred_region
      %40 = dma.done [#allocation6], 4096
    $region21: #{tpu_custom_call.1} parent=1 // pred_fallthru
      _
    %v41 = vld [vmem:[#allocation2] sm:$0xff]
    %v42 = vld [vmem:[#allocation2 + $0x8] sm:$0xff]
    %v43 = vld [vmem:[#allocation5] sm:$0xff]
    %v44 = vld [vmem:[#allocation5 + $0x8] sm:$0xff]
    %v45 = vld [vmem:[#allocation5 + $0x10] sm:$0xff]
    %v46 = vld [vmem:[#allocation5 + $0x18] sm:$0xff]
    %v47 = vld [vmem:[#allocation5 + $0x20] sm:$0xff]
    %v48 = vld [vmem:[#allocation5 + $0x28] sm:$0xff]
    %v49 = vld [vmem:[#allocation5 + $0x30] sm:$0xff]
    %v50 = vld [vmem:[#allocation5 + $0x38] sm:$0xff]
    %v51 = vld [vmem:[#allocation5 + $0x40] sm:$0xff]
    %v52 = vld [vmem:[#allocation5 + $0x48] sm:$0xff]
    %v53 = vld [vmem:[#allocation5 + $0x50] sm:$0xff]
    %v54 = vld [vmem:[#allocation5 + $0x58] sm:$0xff]
    %v55 = vld [vmem:[#allocation5 + $0x60] sm:$0xff]
    %v56 = vld [vmem:[#allocation5 + $0x68] sm:$0xff]
    %v57 = vld [vmem:[#allocation5 + $0x70] sm:$0xff]
    %v58 = vld [vmem:[#allocation5 + $0x78] sm:$0xff]
    %v59 = vld [vmem:[#allocation5 + $0x80] sm:$0xff]
    %v60 = vld [vmem:[#allocation5 + $0x88] sm:$0xff]
    %v61 = vld [vmem:[#allocation5 + $0x90] sm:$0xff]
    %v62 = vld [vmem:[#allocation5 + $0x98] sm:$0xff]
    %v63 = vld [vmem:[#allocation5 + $0xa0] sm:$0xff]
    %v64 = vld [vmem:[#allocation5 + $0xa8] sm:$0xff]
    %v65 = vld [vmem:[#allocation5 + $0xb0] sm:$0xff]
    %v66 = vld [vmem:[#allocation5 + $0xb8] sm:$0xff]
    %v67 = vld [vmem:[#allocation5 + $0xc0] sm:$0xff]
    %v68 = vld [vmem:[#allocation5 + $0xc8] sm:$0xff]
    %v69 = vld [vmem:[#allocation5 + $0xd0] sm:$0xff]
    %v70 = vld [vmem:[#allocation5 + $0xd8] sm:$0xff]
    %v71 = vld [vmem:[#allocation5 + $0xe0] sm:$0xff]
    %v72 = vld [vmem:[#allocation5 + $0xe8] sm:$0xff]
    %v73 = vld [vmem:[#allocation5 + $0xf0] sm:$0xff]
    %v74 = vld [vmem:[#allocation5 + $0xf8] sm:$0xff]
    %v75 = vld [vmem:[%s2] sm:$0x1]
    %v77 = vlaneseq
    %v78 = vshrl.u32 %v77, 7
    %v79 = vsub.s32 0, %v78
    %v80 = vrot.slane %v75, %v79
    %v84 = vcombine.high %v41, %v41
    %v86 = vunpack.c.l.s4 1983009808
    %v87 = vunpack.c.0.s8 %v86
    %v88 = vlaneseq
    %v89 = vshrl.u32 %v88, 7
    %v90 = vsub.s32 %v87, %v89
    %v91 = vrot.slane %v41, %v90
    %v93 = vunpack.c.l.s4 1983009808
    %v94 = vunpack.c.0.s8 %v93
    %v95 = vlaneseq
    %v96 = vshrl.u32 %v95, 7
    %v97 = vsub.s32 %v94, %v96
    %v98 = vrot.slane %v84, %v97
    %v99 = vcombine.high %v91, %v91
    %v100 = vcombine.high %v98, %v98
    %v101 = vcombine.high %v42, %v42
    %v103 = vunpack.c.l.s4 1983009808
    %v104 = vunpack.c.0.s8 %v103
    %v105 = vlaneseq
    %v106 = vshrl.u32 %v105, 7
    %v107 = vsub.s32 %v104, %v106
    %v108 = vrot.slane %v42, %v107
    %v110 = vunpack.c.l.s4 1983009808
    %v111 = vunpack.c.0.s8 %v110
    %v112 = vlaneseq
    %v113 = vshrl.u32 %v112, 7
    %v114 = vsub.s32 %v111, %v113
    %v115 = vrot.slane %v101, %v114
    %v116 = vcombine.high %v108, %v108
    %v117 = vcombine.high %v115, %v115
    %126 = vmatprep.subr.mxu0 0.0
    %127 = vmatpush1.xpose.msra.mxu0 0.0
    %128 = vmatprep.subr.mxu0 0.0
    %129 = vmatpush1.xpose.msra.mxu0 0.0
    %130 = vmatprep.subr.mxu0 0.0
    %131 = vmatpush1.xpose.msra.mxu0 0.0
    %132 = vmatprep.subr.mxu0 0.0
    %133 = vmatpush1.xpose.msra.mxu0 0.0
    %134 = vmatprep.subr.mxu0 0.0
    %135 = vmatpush1.xpose.msra.mxu0 0.0
    %136 = vmatprep.subr.mxu0 0.0
    %137 = vmatpush1.xpose.msra.mxu0 0.0
    %138 = vmatprep.subr.mxu0 0.0
    %139 = vmatpush1.xpose.msra.mxu0 0.0
    %140 = vmatprep.subr.mxu0 0.0
    %141 = vmatpush1.xpose.msra.mxu0 0.0
    %142 = vmatprep.subr.mxu0 0.0
    %143 = vmatpush1.xpose.msra.mxu0 0.0
    %144 = vmatprep.subr.mxu0 0.0
    %145 = vmatpush1.xpose.msra.mxu0 0.0
    %146 = vmatprep.subr.mxu0 0.0
    %147 = vmatpush1.xpose.msra.mxu0 0.0
    %148 = vmatprep.subr.mxu0 0.0
    %149 = vmatpush1.xpose.msra.mxu0 0.0
    %150 = vmatprep.subr.mxu0 %v68
    %151 = vmatpush1.xpose.msra.mxu0 %v67
    %152 = vmatprep.subr.mxu0 %v60
    %153 = vmatpush1.xpose.msra.mxu0 %v59
    %154 = vmatprep.subr.mxu0 %v52
    %155 = vmatpush1.xpose.msra.mxu0 %v51
    %156 = vmatprep.subr.mxu0 %v44
    %157 = vmatpush1.xpose.msra.mxu0 %v43
    %158 = vmatprep.subr.mxu0 0.0
    %159 = vmatpush2.xpose.msra.mxu0 0.0
    %160 = vmatprep.subr.mxu0 0.0
    %161 = vmatpush2.xpose.msra.mxu0 0.0
    %162 = vmatprep.subr.mxu0 0.0
    %163 = vmatpush2.xpose.msra.mxu0 0.0
    %164 = vmatprep.subr.mxu0 0.0
    %165 = vmatpush2.xpose.msra.mxu0 0.0
    %166 = vmatprep.subr.mxu0 0.0
    %167 = vmatpush2.xpose.msra.mxu0 0.0
    %168 = vmatprep.subr.mxu0 0.0
    %169 = vmatpush2.xpose.msra.mxu0 0.0
    %170 = vmatprep.subr.mxu0 0.0
    %171 = vmatpush2.xpose.msra.mxu0 0.0
    %172 = vmatprep.subr.mxu0 0.0
    %173 = vmatpush2.xpose.msra.mxu0 0.0
    %174 = vmatprep.subr.mxu0 0.0
    %175 = vmatpush2.xpose.msra.mxu0 0.0
    %176 = vmatprep.subr.mxu0 0.0
    %177 = vmatpush2.xpose.msra.mxu0 0.0
    %178 = vmatprep.subr.mxu0 0.0
    %179 = vmatpush2.xpose.msra.mxu0 0.0
    %180 = vmatprep.subr.mxu0 0.0
    %181 = vmatpush2.xpose.msra.mxu0 0.0
    %182 = vmatprep.subr.mxu0 0.0
    %183 = vmatpush2.xpose.msra.mxu0 0.0
    %184 = vmatprep.subr.mxu0 0.0
    %185 = vmatpush2.xpose.msra.mxu0 0.0
    %186 = vmatprep.subr.mxu0 0.0
    %187 = vmatpush2.xpose.msra.mxu0 0.0
    %188 = vmatprep.subr.mxu0 0.0
    %189 = vmatpush2.xpose.msra.mxu0 0.0
    %190 = vmatprep.mubr.f32.mxu0 %v99
    %191 = vmatmul.mubr.f32.gmra.mxu0 %v91
    %v192 = vpop.f32.mrf.mxu0
    %v193 = vadd.f32 %v80, %v192
    %v194 = vpop.f32.mrf.mxu0
    %195 = vdwg.mxu0
    %196 = vmatprep.subr.mxu0 0.0
    %197 = vmatpush1.xpose.msra.mxu0 0.0
    %198 = vmatprep.subr.mxu0 0.0
    %199 = vmatpush1.xpose.msra.mxu0 0.0
    %200 = vmatprep.subr.mxu0 0.0
    %201 = vmatpush1.xpose.msra.mxu0 0.0
    %202 = vmatprep.subr.mxu0 0.0
    %203 = vmatpush1.xpose.msra.mxu0 0.0
    %204 = vmatprep.subr.mxu0 0.0
    %205 = vmatpush1.xpose.msra.mxu0 0.0
    %206 = vmatprep.subr.mxu0 0.0
    %207 = vmatpush1.xpose.msra.mxu0 0.0
    %208 = vmatprep.subr.mxu0 0.0
    %209 = vmatpush1.xpose.msra.mxu0 0.0
    %210 = vmatprep.subr.mxu0 0.0
    %211 = vmatpush1.xpose.msra.mxu0 0.0
    %212 = vmatprep.subr.mxu0 0.0
    %213 = vmatpush1.xpose.msra.mxu0 0.0
    %214 = vmatprep.subr.mxu0 0.0
    %215 = vmatpush1.xpose.msra.mxu0 0.0
    %216 = vmatprep.subr.mxu0 0.0
    %217 = vmatpush1.xpose.msra.mxu0 0.0
    %218 = vmatprep.subr.mxu0 0.0
    %219 = vmatpush1.xpose.msra.mxu0 0.0
    %220 = vmatprep.subr.mxu0 %v70
    %221 = vmatpush1.xpose.msra.mxu0 %v69
    %222 = vmatprep.subr.mxu0 %v62
    %223 = vmatpush1.xpose.msra.mxu0 %v61
    %224 = vmatprep.subr.mxu0 %v54
    %225 = vmatpush1.xpose.msra.mxu0 %v53
    %226 = vmatprep.subr.mxu0 %v46
    %227 = vmatpush1.xpose.msra.mxu0 %v45
    %228 = vmatprep.subr.mxu0 0.0
    %229 = vmatpush2.xpose.msra.mxu0 0.0
    %230 = vmatprep.subr.mxu0 0.0
    %231 = vmatpush2.xpose.msra.mxu0 0.0
    %232 = vmatprep.subr.mxu0 0.0
    %233 = vmatpush2.xpose.msra.mxu0 0.0
    %234 = vmatprep.subr.mxu0 0.0
    %235 = vmatpush2.xpose.msra.mxu0 0.0
    %236 = vmatprep.subr.mxu0 0.0
    %237 = vmatpush2.xpose.msra.mxu0 0.0
    %238 = vmatprep.subr.mxu0 0.0
    %239 = vmatpush2.xpose.msra.mxu0 0.0
    %240 = vmatprep.subr.mxu0 0.0
    %241 = vmatpush2.xpose.msra.mxu0 0.0
    %242 = vmatprep.subr.mxu0 0.0
    %243 = vmatpush2.xpose.msra.mxu0 0.0
    %244 = vmatprep.subr.mxu0 0.0
    %245 = vmatpush2.xpose.msra.mxu0 0.0
    %246 = vmatprep.subr.mxu0 0.0
    %247 = vmatpush2.xpose.msra.mxu0 0.0
    %248 = vmatprep.subr.mxu0 0.0
    %249 = vmatpush2.xpose.msra.mxu0 0.0
    %250 = vmatprep.subr.mxu0 0.0
    %251 = vmatpush2.xpose.msra.mxu0 0.0
    %252 = vmatprep.subr.mxu0 0.0
    %253 = vmatpush2.xpose.msra.mxu0 0.0
    %254 = vmatprep.subr.mxu0 0.0
    %255 = vmatpush2.xpose.msra.mxu0 0.0
    %256 = vmatprep.subr.mxu0 0.0
    %257 = vmatpush2.xpose.msra.mxu0 0.0
    %258 = vmatprep.subr.mxu0 0.0
    %259 = vmatpush2.xpose.msra.mxu0 0.0
    %260 = vmatprep.mubr.f32.mxu0 %v100
    %261 = vmatmul.mubr.f32.gmra.mxu0 %v98
    %v262 = vpop.f32.mrf.mxu0
    %v263 = vadd.f32 %v193, %v262
    %v264 = vpop.f32.mrf.mxu0
    %265 = vdwg.mxu0
    %266 = vmatprep.subr.mxu0 0.0
    %267 = vmatpush1.xpose.msra.mxu0 0.0
    %268 = vmatprep.subr.mxu0 0.0
    %269 = vmatpush1.xpose.msra.mxu0 0.0
    %270 = vmatprep.subr.mxu0 0.0
    %271 = vmatpush1.xpose.msra.mxu0 0.0
    %272 = vmatprep.subr.mxu0 0.0
    %273 = vmatpush1.xpose.msra.mxu0 0.0
    %274 = vmatprep.subr.mxu0 0.0
    %275 = vmatpush1.xpose.msra.mxu0 0.0
    %276 = vmatprep.subr.mxu0 0.0
    %277 = vmatpush1.xpose.msra.mxu0 0.0
    %278 = vmatprep.subr.mxu0 0.0
    %279 = vmatpush1.xpose.msra.mxu0 0.0
    %280 = vmatprep.subr.mxu0 0.0
    %281 = vmatpush1.xpose.msra.mxu0 0.0
    %282 = vmatprep.subr.mxu0 0.0
    %283 = vmatpush1.xpose.msra.mxu0 0.0
    %284 = vmatprep.subr.mxu0 0.0
    %285 = vmatpush1.xpose.msra.mxu0 0.0
    %286 = vmatprep.subr.mxu0 0.0
    %287 = vmatpush1.xpose.msra.mxu0 0.0
    %288 = vmatprep.subr.mxu0 0.0
    %289 = vmatpush1.xpose.msra.mxu0 0.0
    %290 = vmatprep.subr.mxu0 %v72
    %291 = vmatpush1.xpose.msra.mxu0 %v71
    %292 = vmatprep.subr.mxu0 %v64
    %293 = vmatpush1.xpose.msra.mxu0 %v63
    %294 = vmatprep.subr.mxu0 %v56
    %295 = vmatpush1.xpose.msra.mxu0 %v55
    %296 = vmatprep.subr.mxu0 %v48
    %297 = vmatpush1.xpose.msra.mxu0 %v47
    %298 = vmatprep.subr.mxu0 0.0
    %299 = vmatpush2.xpose.msra.mxu0 0.0
    %300 = vmatprep.subr.mxu0 0.0
    %301 = vmatpush2.xpose.msra.mxu0 0.0
    %302 = vmatprep.subr.mxu0 0.0
    %303 = vmatpush2.xpose.msra.mxu0 0.0
    %304 = vmatprep.subr.mxu0 0.0
    %305 = vmatpush2.xpose.msra.mxu0 0.0
    %306 = vmatprep.subr.mxu0 0.0
    %307 = vmatpush2.xpose.msra.mxu0 0.0
    %308 = vmatprep.subr.mxu0 0.0
    %309 = vmatpush2.xpose.msra.mxu0 0.0
    %310 = vmatprep.subr.mxu0 0.0
    %311 = vmatpush2.xpose.msra.mxu0 0.0
    %312 = vmatprep.subr.mxu0 0.0
    %313 = vmatpush2.xpose.msra.mxu0 0.0
    %314 = vmatprep.subr.mxu0 0.0
    %315 = vmatpush2.xpose.msra.mxu0 0.0
    %316 = vmatprep.subr.mxu0 0.0
    %317 = vmatpush2.xpose.msra.mxu0 0.0
    %318 = vmatprep.subr.mxu0 0.0
    %319 = vmatpush2.xpose.msra.mxu0 0.0
    %320 = vmatprep.subr.mxu0 0.0
    %321 = vmatpush2.xpose.msra.mxu0 0.0
    %322 = vmatprep.subr.mxu0 0.0
    %323 = vmatpush2.xpose.msra.mxu0 0.0
    %324 = vmatprep.subr.mxu0 0.0
    %325 = vmatpush2.xpose.msra.mxu0 0.0
    %326 = vmatprep.subr.mxu0 0.0
    %327 = vmatpush2.xpose.msra.mxu0 0.0
    %328 = vmatprep.subr.mxu0 0.0
    %329 = vmatpush2.xpose.msra.mxu0 0.0
    %330 = vmatprep.mubr.f32.mxu0 %v116
    %331 = vmatmul.mubr.f32.gmra.mxu0 %v108
    %v332 = vpop.f32.mrf.mxu0
    %v333 = vadd.f32 %v263, %v332
    %v334 = vpop.f32.mrf.mxu0
    %335 = vdwg.mxu0
    %336 = vmatprep.subr.mxu0 0.0
    %337 = vmatpush1.xpose.msra.mxu0 0.0
    %338 = vmatprep.subr.mxu0 0.0
    %339 = vmatpush1.xpose.msra.mxu0 0.0
    %340 = vmatprep.subr.mxu0 0.0
    %341 = vmatpush1.xpose.msra.mxu0 0.0
    %342 = vmatprep.subr.mxu0 0.0
    %343 = vmatpush1.xpose.msra.mxu0 0.0
    %344 = vmatprep.subr.mxu0 0.0
    %345 = vmatpush1.xpose.msra.mxu0 0.0
    %346 = vmatprep.subr.mxu0 0.0
    %347 = vmatpush1.xpose.msra.mxu0 0.0
    %348 = vmatprep.subr.mxu0 0.0
    %349 = vmatpush1.xpose.msra.mxu0 0.0
    %350 = vmatprep.subr.mxu0 0.0
    %351 = vmatpush1.xpose.msra.mxu0 0.0
    %352 = vmatprep.subr.mxu0 0.0
    %353 = vmatpush1.xpose.msra.mxu0 0.0
    %354 = vmatprep.subr.mxu0 0.0
    %355 = vmatpush1.xpose.msra.mxu0 0.0
    %356 = vmatprep.subr.mxu0 0.0
    %357 = vmatpush1.xpose.msra.mxu0 0.0
    %358 = vmatprep.subr.mxu0 0.0
    %359 = vmatpush1.xpose.msra.mxu0 0.0
    %360 = vmatprep.subr.mxu0 %v74
    %361 = vmatpush1.xpose.msra.mxu0 %v73
    %362 = vmatprep.subr.mxu0 %v66
    %363 = vmatpush1.xpose.msra.mxu0 %v65
    %364 = vmatprep.subr.mxu0 %v58
    %365 = vmatpush1.xpose.msra.mxu0 %v57
    %366 = vmatprep.subr.mxu0 %v50
    %367 = vmatpush1.xpose.msra.mxu0 %v49
    %368 = vmatprep.subr.mxu0 0.0
    %369 = vmatpush2.xpose.msra.mxu0 0.0
    %370 = vmatprep.subr.mxu0 0.0
    %371 = vmatpush2.xpose.msra.mxu0 0.0
    %372 = vmatprep.subr.mxu0 0.0
    %373 = vmatpush2.xpose.msra.mxu0 0.0
    %374 = vmatprep.subr.mxu0 0.0
    %375 = vmatpush2.xpose.msra.mxu0 0.0
    %376 = vmatprep.subr.mxu0 0.0
    %377 = vmatpush2.xpose.msra.mxu0 0.0
    %378 = vmatprep.subr.mxu0 0.0
    %379 = vmatpush2.xpose.msra.mxu0 0.0
    %380 = vmatprep.subr.mxu0 0.0
    %381 = vmatpush2.xpose.msra.mxu0 0.0
    %382 = vmatprep.subr.mxu0 0.0
    %383 = vmatpush2.xpose.msra.mxu0 0.0
    %384 = vmatprep.subr.mxu0 0.0
    %385 = vmatpush2.xpose.msra.mxu0 0.0
    %386 = vmatprep.subr.mxu0 0.0
    %387 = vmatpush2.xpose.msra.mxu0 0.0
    %388 = vmatprep.subr.mxu0 0.0
    %389 = vmatpush2.xpose.msra.mxu0 0.0
    %390 = vmatprep.subr.mxu0 0.0
    %391 = vmatpush2.xpose.msra.mxu0 0.0
    %392 = vmatprep.subr.mxu0 0.0
    %393 = vmatpush2.xpose.msra.mxu0 0.0
    %394 = vmatprep.subr.mxu0 0.0
    %395 = vmatpush2.xpose.msra.mxu0 0.0
    %396 = vmatprep.subr.mxu0 0.0
    %397 = vmatpush2.xpose.msra.mxu0 0.0
    %398 = vmatprep.subr.mxu0 0.0
    %399 = vmatpush2.xpose.msra.mxu0 0.0
    %400 = vmatprep.mubr.f32.mxu0 %v117
    %401 = vmatmul.mubr.f32.gmra.mxu0 %v115
    %v402 = vpop.f32.mrf.mxu0
    %v403 = vadd.f32 %v333, %v402
    %v404 = vpop.f32.mrf.mxu0
    %405 = vdwg.mxu0
    %vm406 = vcmask 254976
    %407 = vst.msk [vmem:[#allocation7] sm:$0x3] %vm406, %v403
    // Predicated region
    $region22: #{tpu_custom_call.1} parent=1 // pred_check
      _
    $region23: #{tpu_custom_call.1} parent=1 // pred_check_branch
      %409 = sbr.rel (0) target = $region25
    $region24: #{tpu_custom_call.1} parent=1 // pred_region
      %s411 = ssub.s32 32, 32
      %412 = vsyncadd [#allocation4], %s411
      %s414 = sshll.u32 [#allocation7], 4
      %s415 = int_to_ptr.vmem [resolvable:$true] %s414
      %417 = dma.vmem_to_hbm [thread:$0]  %s415, 32, %s3, [#allocation4]
    $region25: #{tpu_custom_call.1} parent=1 // pred_fallthru
      _
    // Predicated region
    $region26: #{tpu_custom_call.1} parent=1 // pred_check
      _
    $region27: #{tpu_custom_call.1} parent=1 // pred_check_branch
      %419 = sbr.rel (0) target = $region29
    $region28: #{tpu_custom_call.1} parent=1 // pred_region
      %420 = dma.done [#allocation4], 32
    $region29: #{tpu_custom_call.1} parent=1 // pred_fallthru
      _
    %421 = vsyncpa [#allocation3], 1
    %422 = vsyncpa [#allocation6], 1
    %423 = vsyncpa [#allocation4], 1

</llo_original>
